<compile_context>
chip_gen: v7x
topology: tpu7x:2x2x1
jax: 0.10.0
libtpu: 0.0.40
codegen_flags: <defaults>
</compile_context>

<pallas_src>
import jax
import jax.numpy as jnp
import numpy as np
from jax.experimental import pallas as pl
from jax.experimental.pallas import tpu as pltpu


def _parallel_mlp_kernel(x_ref,
                         w1_ref, b1_ref,
                         w2_ref, b2_ref,
                         w3r_ref, b3_ref,
                         wfc3_ref, bfc3_ref,
                         woutr_ref, bout_ref,
                         out_ref,
                         acc_ref):
    # grid = (n_batch_tiles, dims);  d = branch index (reduction axis, innermost)
    # x_ref:    (1, B, F)    bf16   per-branch batch slab (lane-dense F=256)
    # w1_ref:   (1, F, 64)   bf16   b1_ref: (1, 1, 64)  f32
    # w2_ref:   (1, 64, 128) bf16   b2_ref: (1, 1, 128) f32
    # w3r_ref:  (1, 1, 128)  f32    b3_ref: (1, 1, 1)   f32   (out1[ii] as a VPU row)
    # wfc3_ref: (1, 1, 64)   f32    bfc3_ref: (1, 64)   f32
    # woutr_ref:(1, 64)      f32    bout_ref: (1, 1)    f32   (out as a VPU row)
    # out_ref:  (B, 1)       f32
    # acc_ref:  (B, 64)      f32    VMEM scratch, persists across the dims axis
    d = pl.program_id(1)

    @pl.when(d == 0)
    def _init():
        # fc3 pre-activation accumulator starts at the fc3 bias.
        acc_ref[...] = jnp.zeros_like(acc_ref) + bfc3_ref[...]

    xi = x_ref[0]                                                # (B, F) bf16
    # x[isnan(x)] = 0  -- must happen before any matmul so NaN*0 never reaches the MXU
    xi = jnp.where(jnp.isnan(xi), jnp.zeros_like(xi), xi)

    # fc1[ii] + ReLU  (bf16 MXU, f32 accumulation)
    h1 = jnp.maximum(
        jnp.dot(xi, w1_ref[0], preferred_element_type=jnp.float32) + b1_ref[0],
        0.0)                                                     # (B, 64) f32
    # fc2[ii] + ReLU
    h2 = jnp.maximum(
        jnp.dot(h1.astype(jnp.bfloat16), w2_ref[0],
                preferred_element_type=jnp.float32) + b2_ref[0],
        0.0)                                                     # (B, 128) f32
    # out1[ii]: 128 -> 1 as a VPU multiply + lane reduction (avoid 1-lane MXU dot)
    o = jnp.sum(h2 * w3r_ref[0], axis=-1, keepdims=True) + b3_ref[0]   # (B, 1)

    # Fused concat + fc3:  ReLU(concat) @ Wfc3 == sum_ii relu(o_ii) * Wfc3[ii, :]
    acc_ref[...] += jnp.maximum(o, 0.0) * wfc3_ref[0]            # (B, 64)

    @pl.when(d == pl.num_programs(1) - 1)
    def _finalize():
        h3 = jnp.maximum(acc_ref[...], 0.0)                      # ReLU(fc3(...))
        # out: 64 -> 1 as a VPU multiply + lane reduction
        out_ref[...] = (jnp.sum(h3 * woutr_ref[...], axis=-1, keepdims=True)
                        + bout_ref[...])                         # (B, 1)


def parallel_mlp_net(x, params, *, max_tile=1024):
    """Wrapper: x of shape (N, dims, *spatial) -> (N, 1) outputs."""
    (w1, b1, w2, b2, w3, b3, wfc3, bfc3, wout, bout) = params
    N = x.shape[0]
    dims = x.shape[1]
    F = int(np.prod(x.shape[2:]))
    h3_dim = wfc3.shape[2]

    # Glue: flatten spatial dims, branch axis first (cheap leading-axis blocks),
    # 256-wide feature axis lane-dense.  x is the only N-scaling tensor -> bf16 stream.
    x_t = jnp.transpose(x.reshape(N, dims, F), (1, 0, 2)).astype(jnp.bfloat16)

    # One-time weight casts / row reshapes for the kernel.
    w1b = w1.astype(jnp.bfloat16)                       # (dims, F, 64)
    w2b = w2.astype(jnp.bfloat16)                       # (dims, 64, 128)
    w3r = w3.reshape(dims, 1, w3.shape[1]).astype(jnp.float32)     # (dims, 1, 128)
    woutr = wout.reshape(1, wout.shape[0]).astype(jnp.float32)     # (1, 64)
    b1 = b1.astype(jnp.float32)
    b2 = b2.astype(jnp.float32)
    b3 = b3.astype(jnp.float32)
    wfc3 = wfc3.astype(jnp.float32)
    bfc3 = bfc3.astype(jnp.float32)
    bout = bout.astype(jnp.float32)

    # Batch tiling: multiples of 8 rows, tiles up to max_tile, padding waste < 8 rows
    # per tile, and >=2 tiles for batches >=512 so v7x's second TensorCore gets work.
    n8 = ((max(N, 1) + 7) // 8) * 8
    n_tiles = max(1, (n8 + max_tile - 1) // max_tile)
    if n_tiles == 1 and n8 >= 512:
        n_tiles = 2
    b_tile = (((n8 + n_tiles - 1) // n_tiles + 7) // 8) * 8
    n_pad = b_tile * n_tiles
    if n_pad != N:
        x_t = jnp.pad(x_t, ((0, 0), (0, n_pad - N), (0, 0)))

    grid = (n_tiles, dims)                              # reduction (dims) axis last

    def per_branch(shape):
        blk = (1,) + tuple(shape[1:])
        return pl.BlockSpec(blk, lambda n, d: (d,) + (0,) * (len(shape) - 1))

    def replicated(shape):
        return pl.BlockSpec(tuple(shape), lambda n, d: (0,) * len(shape))

    out = pl.pallas_call(
        _parallel_mlp_kernel,
        out_shape=jax.ShapeDtypeStruct((n_pad, 1), jnp.float32),
        grid=grid,
        in_specs=[
            pl.BlockSpec((1, b_tile, F), lambda n, d: (d, n, 0)),   # x slab per branch
            per_branch(w1b.shape), per_branch(b1.shape),
            per_branch(w2b.shape), per_branch(b2.shape),
            per_branch(w3r.shape), per_branch(b3.shape),
            per_branch(wfc3.shape), replicated(bfc3.shape),
            replicated(woutr.shape), replicated(bout.shape),
        ],
        # TODO(synk): output stays (b_tile, 1) -> 1-lane vst.msk stores; lane-dense
        # reformulation skipped since output volume is only 4 B/sample.
        out_specs=pl.BlockSpec((b_tile, 1), lambda n, d: (n, 0)),
        scratch_shapes=[pltpu.VMEM((b_tile, h3_dim), jnp.float32)],
        compiler_params=pltpu.CompilerParams(
            dimension_semantics=("parallel", "arbitrary"),   # megacore on v7x
            vmem_limit_bytes=32 * 1024 * 1024),
    )(x_t, w1b, b1, w2b, b2, w3r, b3, wfc3, bfc3, woutr, bout)
    return out[:N]


def init_params(key, dims=4, input_nodes=256):
    """Deterministic synthetic parameters in kernel-friendly (in, out) layouts (f32)."""
    ks = jax.random.split(key, 10)
    s = 0.1
    w1 = jax.random.normal(ks[0], (dims, input_nodes, 64), jnp.float32) * s
    b1 = jax.random.normal(ks[1], (dims, 1, 64), jnp.float32) * s
    w2 = jax.random.normal(ks[2], (dims, 64, 128), jnp.float32) * s
    b2 = jax.random.normal(ks[3], (dims, 1, 128), jnp.float32) * s
    w3 = jax.random.normal(ks[4], (dims, 128, 1), jnp.float32) * s
    b3 = jax.random.normal(ks[5], (dims, 1, 1), jnp.float32) * s
    wfc3 = jax.random.normal(ks[6], (dims, 1, 64), jnp.float32) * s
    bfc3 = jax.random.normal(ks[7], (1, 64), jnp.float32) * s
    wout = jax.random.normal(ks[8], (64, 1), jnp.float32) * s
    bout = jax.random.normal(ks[9], (1, 1), jnp.float32) * s
    return w1, b1, w2, b2, w3, b3, wfc3, bfc3, wout, bout


def reference_forward(x, params):
    """Pure-JAX f32 reference mirroring the PyTorch ParallelMLPNet.forward semantics."""
    (w1, b1, w2, b2, w3, b3, wfc3, bfc3, wout, bout) = params
    N, dims = x.shape[0], x.shape[1]
    xm = jnp.where(jnp.isnan(x), jnp.zeros_like(x), x)
    outs = []
    for ii in range(dims):
        xi = xm[:, ii].reshape(N, -1)
        h1 = jnp.maximum(xi @ w1[ii] + b1[ii], 0.0)
        h2 = jnp.maximum(h1 @ w2[ii] + b2[ii], 0.0)
        outs.append(h2 @ w3[ii] + b3[ii])
    xii = jnp.maximum(jnp.concatenate(outs, axis=1), 0.0)        # (N, dims)
    h3 = jnp.maximum(xii @ wfc3.reshape(dims, -1) + bfc3, 0.0)   # (N, 64)
    return h3 @ wout + bout                                      # (N, 1)


if __name__ == "__main__":
    key = jax.random.PRNGKey(0)
    k_x, k_p = jax.random.split(key)

    # input_size = (dims, 16, 16) -> dims=4 parallel branches, input_nodes=256
    N, dims, H, W = 2, 4, 16, 16
    x = jax.random.uniform(k_x, (N, dims, H, W), jnp.float32)
    x = x.at[0, 0, 0, 0].set(jnp.nan)            # exercise the nan -> 0 path
    params = init_params(k_p, dims=dims, input_nodes=H * W)

    out = parallel_mlp_net(x, params)
    out = jax.block_until_ready(out)

    ref = reference_forward(x, params)
    # bf16 MXU path vs f32 reference -> looser tolerance than a pure-f32 kernel.
    np.testing.assert_allclose(np.asarray(out), np.asarray(ref), rtol=2e-2, atol=2e-2)
    assert out.shape == (N, 1)

    print("KERNEL_OK")
</pallas_src>

<mosaic_0001>
module attributes {stable_mosaic.version = 11 : i64} {
  func.func @_parallel_mlp_kernel(%arg0: i32, %arg1: i32, %arg2: memref<1x8x256xbf16, #tpu.memory_space<vmem>>, %arg3: memref<1x256x64xbf16, #tpu.memory_space<vmem>>, %arg4: memref<1x1x64xf32, #tpu.memory_space<vmem>>, %arg5: memref<1x64x128xbf16, #tpu.memory_space<vmem>>, %arg6: memref<1x1x128xf32, #tpu.memory_space<vmem>>, %arg7: memref<1x1x128xf32, #tpu.memory_space<vmem>>, %arg8: memref<1x1x1xf32, #tpu.memory_space<vmem>>, %arg9: memref<1x1x64xf32, #tpu.memory_space<vmem>>, %arg10: memref<1x64xf32, #tpu.memory_space<vmem>>, %arg11: memref<1x64xf32, #tpu.memory_space<vmem>>, %arg12: memref<1x1xf32, #tpu.memory_space<vmem>>, %arg13: memref<8x1xf32, #tpu.memory_space<vmem>>, %arg14: memref<8x64xf32, #tpu.memory_space<vmem>>) attributes {dimension_semantics = [#tpu.dimension_semantics<parallel>, #tpu.dimension_semantics<arbitrary>], iteration_bounds = array<i64: 1, 4>, scalar_prefetch = 0 : i64, scratch_operands = 1 : i64, tpu.core_type = #tpu.core_type<tc>, window_params = [{transform_indices = @transform_0, window_bounds = array<i64: 1, 8, 256>}, {transform_indices = @transform_1, window_bounds = array<i64: 1, 256, 64>}, {transform_indices = @transform_2, window_bounds = array<i64: 1, 1, 64>}, {transform_indices = @transform_3, window_bounds = array<i64: 1, 64, 128>}, {transform_indices = @transform_4, window_bounds = array<i64: 1, 1, 128>}, {transform_indices = @transform_5, window_bounds = array<i64: 1, 1, 128>}, {transform_indices = @transform_6, window_bounds = array<i64: 1, 1, 1>}, {transform_indices = @transform_7, window_bounds = array<i64: 1, 1, 64>}, {pipeline_mode = #tpu.pipeline_mode<synchronous>, transform_indices = @transform_8, window_bounds = array<i64: 1, 64>}, {pipeline_mode = #tpu.pipeline_mode<synchronous>, transform_indices = @transform_9, window_bounds = array<i64: 1, 64>}, {pipeline_mode = #tpu.pipeline_mode<synchronous>, transform_indices = @transform_10, window_bounds = array<i64: 1, 1>}, {transform_indices = @transform_11, window_bounds = array<i64: 8, 1>}]} {
    %c0_i32 = arith.constant 0 : i32
    %0 = arith.cmpi eq, %arg1, %c0_i32 : i32
    %1 = arith.extui %0 : i1 to i32
    %c0_i32_0 = arith.constant 0 : i32
    %2 = arith.cmpi ne, %1, %c0_i32_0 : i32
    scf.if %2 {
      %cst_35 = arith.constant 0.000000e+00 : f32
      %50 = vector.broadcast %cst_35 : f32 to vector<8x64xf32>
      %c0_36 = arith.constant 0 : index
      %c0_37 = arith.constant 0 : index
      %51 = vector.load %arg10[%c0_36, %c0_37] : memref<1x64xf32, #tpu.memory_space<vmem>>, vector<1x64xf32>
      %52 = vector.broadcast %51 : vector<1x64xf32> to vector<8x64xf32>
      %53 = arith.addf %50, %52 : vector<8x64xf32>
      %c0_38 = arith.constant 0 : index
      %c0_39 = arith.constant 0 : index
      %54 = vector.load %arg14[%c0_38, %c0_39] : memref<8x64xf32, #tpu.memory_space<vmem>>, vector<8x64xf32>
      tpu.vector_store %arg14[%c0_38, %c0_39], %53 {strides = array<i32>} : memref<8x64xf32, #tpu.memory_space<vmem>>, vector<8x64xf32>,
    } else {
    }
    %c0 = arith.constant 0 : index
    %c0_1 = arith.constant 0 : index
    %c0_2 = arith.constant 0 : index
    %3 = vector.load %arg2[%c0, %c0_1, %c0_2] : memref<1x8x256xbf16, #tpu.memory_space<vmem>>, vector<1x8x256xbf16>
    %4 = vector.shape_cast %3 : vector<1x8x256xbf16> to vector<8x256xbf16>
    %5 = arith.cmpf one, %4, %4 : vector<8x256xbf16>
    %cst = arith.constant 0.000000e+00 : bf16
    %6 = vector.broadcast %cst : bf16 to vector<8x256xbf16>
    %7 = arith.select %5, %6, %4 : vector<8x256xi1>, vector<8x256xbf16>
    %c0_3 = arith.constant 0 : index
    %c0_4 = arith.constant 0 : index
    %c0_5 = arith.constant 0 : index
    %8 = vector.load %arg3[%c0_3, %c0_4, %c0_5] : memref<1x256x64xbf16, #tpu.memory_space<vmem>>, vector<1x256x64xbf16>
    %9 = vector.shape_cast %8 : vector<1x256x64xbf16> to vector<256x64xbf16>
    %cst_6 = arith.constant dense<0.000000e+00> : vector<8x64xf32>
    %10 = tpu.matmul %7, %9, %cst_6 {dimension_numbers = #tpu.dot_dimension_numbers<[1], [0], [0], [1], [0, 0, 1, 1], [], []>} : vector<8x256xbf16>, vector<256x64xbf16>, vector<8x64xf32> -> vector<8x64xf32>
    %c0_7 = arith.constant 0 : index
    %c0_8 = arith.constant 0 : index
    %c0_9 = arith.constant 0 : index
    %11 = vector.load %arg4[%c0_7, %c0_8, %c0_9] : memref<1x1x64xf32, #tpu.memory_space<vmem>>, vector<1x1x64xf32>
    %12 = vector.shape_cast %11 : vector<1x1x64xf32> to vector<1x64xf32>
    %13 = vector.broadcast %12 : vector<1x64xf32> to vector<8x64xf32>
    %14 = arith.addf %10, %13 : vector<8x64xf32>
    %cst_10 = arith.constant 0.000000e+00 : f32
    %15 = vector.broadcast %cst_10 : f32 to vector<8x64xf32>
    %16 = arith.maximumf %14, %15 : vector<8x64xf32>
    %17 = arith.truncf %16 : vector<8x64xf32> to vector<8x64xbf16>
    %c0_11 = arith.constant 0 : index
    %c0_12 = arith.constant 0 : index
    %c0_13 = arith.constant 0 : index
    %18 = vector.load %arg5[%c0_11, %c0_12, %c0_13] : memref<1x64x128xbf16, #tpu.memory_space<vmem>>, vector<1x64x128xbf16>
    %19 = vector.shape_cast %18 : vector<1x64x128xbf16> to vector<64x128xbf16>
    %cst_14 = arith.constant dense<0.000000e+00> : vector<8x128xf32>
    %20 = tpu.matmul %17, %19, %cst_14 {dimension_numbers = #tpu.dot_dimension_numbers<[1], [0], [0], [1], [0, 0, 1, 1], [], []>} : vector<8x64xbf16>, vector<64x128xbf16>, vector<8x128xf32> -> vector<8x128xf32>
    %c0_15 = arith.constant 0 : index
    %c0_16 = arith.constant 0 : index
    %c0_17 = arith.constant 0 : index
    %21 = vector.load %arg6[%c0_15, %c0_16, %c0_17] : memref<1x1x128xf32, #tpu.memory_space<vmem>>, vector<1x1x128xf32>
    %22 = vector.shape_cast %21 : vector<1x1x128xf32> to vector<1x128xf32>
    %23 = vector.broadcast %22 : vector<1x128xf32> to vector<8x128xf32>
    %24 = arith.addf %20, %23 : vector<8x128xf32>
    %cst_18 = arith.constant 0.000000e+00 : f32
    %25 = vector.broadcast %cst_18 : f32 to vector<8x128xf32>
    %26 = arith.maximumf %24, %25 : vector<8x128xf32>
    %c0_19 = arith.constant 0 : index
    %c0_20 = arith.constant 0 : index
    %c0_21 = arith.constant 0 : index
    %27 = vector.load %arg7[%c0_19, %c0_20, %c0_21] : memref<1x1x128xf32, #tpu.memory_space<vmem>>, vector<1x1x128xf32>
    %28 = vector.shape_cast %27 : vector<1x1x128xf32> to vector<1x128xf32>
    %29 = vector.broadcast %28 : vector<1x128xf32> to vector<8x128xf32>
    %30 = arith.mulf %26, %29 : vector<8x128xf32>
    %cst_22 = arith.constant dense<0.000000e+00> : vector<8xf32>
    %31 = vector.multi_reduction <add>, %30, %cst_22 [1] : vector<8x128xf32> to vector<8xf32>
    %32 = vector.shape_cast %31 : vector<8xf32> to vector<8x1xf32>
    %c0_23 = arith.constant 0 : index
    %c0_24 = arith.constant 0 : index
    %c0_25 = arith.constant 0 : index
    %33 = vector.load %arg8[%c0_23, %c0_24, %c0_25] : memref<1x1x1xf32, #tpu.memory_space<vmem>>, vector<1x1x1xf32>
    %34 = vector.shape_cast %33 : vector<1x1x1xf32> to vector<1x1xf32>
    %35 = vector.broadcast %34 : vector<1x1xf32> to vector<8x1xf32>
    %36 = arith.addf %32, %35 : vector<8x1xf32>
    %c0_26 = arith.constant 0 : index
    %c0_27 = arith.constant 0 : index
    %37 = vector.load %arg14[%c0_26, %c0_27] : memref<8x64xf32, #tpu.memory_space<vmem>>, vector<8x64xf32>
    %cst_28 = arith.constant 0.000000e+00 : f32
    %38 = vector.broadcast %cst_28 : f32 to vector<8x1xf32>
    %39 = arith.maximumf %36, %38 : vector<8x1xf32>
    %c0_29 = arith.constant 0 : index
    %c0_30 = arith.constant 0 : index
    %c0_31 = arith.constant 0 : index
    %40 = vector.load %arg9[%c0_29, %c0_30, %c0_31] : memref<1x1x64xf32, #tpu.memory_space<vmem>>, vector<1x1x64xf32>
    %41 = vector.shape_cast %40 : vector<1x1x64xf32> to vector<1x64xf32>
    %42 = vector.broadcast %39 : vector<8x1xf32> to vector<8x64xf32>
    %43 = vector.broadcast %41 : vector<1x64xf32> to vector<8x64xf32>
    %44 = arith.mulf %42, %43 : vector<8x64xf32>
    %45 = arith.addf %37, %44 : vector<8x64xf32>
    %c0_32 = arith.constant 0 : index
    %c0_33 = arith.constant 0 : index
    %46 = vector.load %arg14[%c0_32, %c0_33] : memref<8x64xf32, #tpu.memory_space<vmem>>, vector<8x64xf32>
    tpu.vector_store %arg14[%c0_32, %c0_33], %45 {strides = array<i32>} : memref<8x64xf32, #tpu.memory_space<vmem>>, vector<8x64xf32>,
    %c3_i32 = arith.constant 3 : i32
    %47 = arith.cmpi eq, %arg1, %c3_i32 : i32
    %48 = arith.extui %47 : i1 to i32
    %c0_i32_34 = arith.constant 0 : i32
    %49 = arith.cmpi ne, %48, %c0_i32_34 : i32
    scf.if %49 {
      %c0_35 = arith.constant 0 : index
      %c0_36 = arith.constant 0 : index
      %50 = vector.load %arg14[%c0_35, %c0_36] : memref<8x64xf32, #tpu.memory_space<vmem>>, vector<8x64xf32>
      %cst_37 = arith.constant 0.000000e+00 : f32
      %51 = vector.broadcast %cst_37 : f32 to vector<8x64xf32>
      %52 = arith.maximumf %50, %51 : vector<8x64xf32>
      %c0_38 = arith.constant 0 : index
      %c0_39 = arith.constant 0 : index
      %53 = vector.load %arg11[%c0_38, %c0_39] : memref<1x64xf32, #tpu.memory_space<vmem>>, vector<1x64xf32>
      %54 = vector.broadcast %53 : vector<1x64xf32> to vector<8x64xf32>
      %55 = arith.mulf %52, %54 : vector<8x64xf32>
      %cst_40 = arith.constant dense<0.000000e+00> : vector<8xf32>
      %56 = vector.multi_reduction <add>, %55, %cst_40 [1] : vector<8x64xf32> to vector<8xf32>
      %57 = vector.shape_cast %56 : vector<8xf32> to vector<8x1xf32>
      %c0_41 = arith.constant 0 : index
      %c0_42 = arith.constant 0 : index
      %58 = vector.load %arg12[%c0_41, %c0_42] : memref<1x1xf32, #tpu.memory_space<vmem>>, vector<1x1xf32>
      %59 = vector.broadcast %58 : vector<1x1xf32> to vector<8x1xf32>
      %60 = arith.addf %57, %59 : vector<8x1xf32>
      %c0_43 = arith.constant 0 : index
      %c0_44 = arith.constant 0 : index
      %61 = vector.load %arg13[%c0_43, %c0_44] : memref<8x1xf32, #tpu.memory_space<vmem>>, vector<8x1xf32>
      tpu.vector_store %arg13[%c0_43, %c0_44], %60 {strides = array<i32>} : memref<8x1xf32, #tpu.memory_space<vmem>>, vector<8x1xf32>,
    } else {
    }
    return
  }
  func.func @transform_0(%arg0: i32, %arg1: i32) -> (i32, i32, i32) {
    %c0_i32 = arith.constant 0 : i32
    %c0_i32_0 = arith.constant 0 : i32
    return %arg1, %arg0, %c0_i32 : i32, i32, i32
  }
  func.func @transform_1(%arg0: i32, %arg1: i32) -> (i32, i32, i32) {
    %c0_i32 = arith.constant 0 : i32
    %c0_i32_0 = arith.constant 0 : i32
    %c0_i32_1 = arith.constant 0 : i32
    return %arg1, %c0_i32, %c0_i32_0 : i32, i32, i32
  }
  func.func @transform_2(%arg0: i32, %arg1: i32) -> (i32, i32, i32) {
    %c0_i32 = arith.constant 0 : i32
    %c0_i32_0 = arith.constant 0 : i32
    %c0_i32_1 = arith.constant 0 : i32
    return %arg1, %c0_i32, %c0_i32_0 : i32, i32, i32
  }
  func.func @transform_3(%arg0: i32, %arg1: i32) -> (i32, i32, i32) {
    %c0_i32 = arith.constant 0 : i32
    %c0_i32_0 = arith.constant 0 : i32
    %c0_i32_1 = arith.constant 0 : i32
    return %arg1, %c0_i32, %c0_i32_0 : i32, i32, i32
  }
  func.func @transform_4(%arg0: i32, %arg1: i32) -> (i32, i32, i32) {
    %c0_i32 = arith.constant 0 : i32
    %c0_i32_0 = arith.constant 0 : i32
    %c0_i32_1 = arith.constant 0 : i32
    return %arg1, %c0_i32, %c0_i32_0 : i32, i32, i32
  }
  func.func @transform_5(%arg0: i32, %arg1: i32) -> (i32, i32, i32) {
    %c0_i32 = arith.constant 0 : i32
    %c0_i32_0 = arith.constant 0 : i32
    %c0_i32_1 = arith.constant 0 : i32
    return %arg1, %c0_i32, %c0_i32_0 : i32, i32, i32
  }
  func.func @transform_6(%arg0: i32, %arg1: i32) -> (i32, i32, i32) {
    %c0_i32 = arith.constant 0 : i32
    %c0_i32_0 = arith.constant 0 : i32
    %c0_i32_1 = arith.constant 0 : i32
    return %arg1, %c0_i32, %c0_i32_0 : i32, i32, i32
  }
  func.func @transform_7(%arg0: i32, %arg1: i32) -> (i32, i32, i32) {
    %c0_i32 = arith.constant 0 : i32
    %c0_i32_0 = arith.constant 0 : i32
    %c0_i32_1 = arith.constant 0 : i32
    return %arg1, %c0_i32, %c0_i32_0 : i32, i32, i32
  }
  func.func @transform_8(%arg0: i32, %arg1: i32) -> (i32, i32) {
    %c0_i32 = arith.constant 0 : i32
    %c0_i32_0 = arith.constant 0 : i32
    %c0_i32_1 = arith.constant 0 : i32
    return %c0_i32, %c0_i32_0 : i32, i32
  }
  func.func @transform_9(%arg0: i32, %arg1: i32) -> (i32, i32) {
    %c0_i32 = arith.constant 0 : i32
    %c0_i32_0 = arith.constant 0 : i32
    %c0_i32_1 = arith.constant 0 : i32
    return %c0_i32, %c0_i32_0 : i32, i32
  }
  func.func @transform_10(%arg0: i32, %arg1: i32) -> (i32, i32) {
    %c0_i32 = arith.constant 0 : i32
    %c0_i32_0 = arith.constant 0 : i32
    %c0_i32_1 = arith.constant 0 : i32
    return %c0_i32, %c0_i32_0 : i32, i32
  }
  func.func @transform_11(%arg0: i32, %arg1: i32) -> (i32, i32) {
    %c0_i32 = arith.constant 0 : i32
    %c0_i32_0 = arith.constant 0 : i32
    return %arg0, %c0_i32 : i32, i32
  }
}

</mosaic_0001>

<llo_original>
// kernel: tpu_custom_call.1
$region0: #{tpu_custom_call.1}
  #allocation0 [shape = 'u32[]', space=smem, size = 0x4, offset = 0x4, fixed_abs, tag = 'smem constant byte address 0x4 - core index']
  #allocation1 [shape = 'u32[144,128]{1,0:T(1,128)}', space=vmem, size = 0x12000, scoped, tag = 'internal scratch']
  #allocation2 [shape = 'f32[8,64]{1,0:T(8,128)}', space=vmem, size = 0x1000, scoped, tag = 'scratch operand']
  #allocation3 [shape = 'f32[1,1]{1,0:T(1,128)S(1)}', space=vmem, size = 0x200, scoped, tag = 'scoped memory for tpu_custom_call.1']
  %s0 = inlined_call_operand.vmem [shape: bf16[4,8,256], index: 0, kind: input, shape index: {}]
  %s1 = inlined_call_operand.vmem [shape: bf16[4,256,64], index: 1, kind: input, shape index: {}]
  %s2 = inlined_call_operand.vmem [shape: f32[4,1,64], index: 2, kind: input, shape index: {}]
  %s3 = inlined_call_operand.vmem [shape: bf16[4,64,128], index: 3, kind: input, shape index: {}]
  %s4 = inlined_call_operand.vmem [shape: f32[4,1,128], index: 4, kind: input, shape index: {}]
  %s5 = inlined_call_operand.vmem [shape: f32[4,1,128], index: 5, kind: input, shape index: {}]
  %s6 = inlined_call_operand.vmem [shape: f32[4,1,1], index: 6, kind: input, shape index: {}]
  %s7 = inlined_call_operand.vmem [shape: f32[4,1,64], index: 7, kind: input, shape index: {}]
  %s8 = inlined_call_operand.vmem [shape: f32[1,64], index: 8, kind: input, shape index: {}]
  %s9 = inlined_call_operand.vmem [shape: f32[1,64], index: 9, kind: input, shape index: {}]
  %s10 = inlined_call_operand.<no memory space> [shape: f32[1,1], index: 10, kind: input, shape index: {}]
  %s11 = inlined_call_operand.vmem [shape: f32[8,1], index: 11, kind: output, shape index: {}]
  %s12 = sld [smem:[#allocation0]]
  $region85: #{tpu_custom_call.1} parent=0
    _
  %s14 = ssub.s32 1, %s12
  %s15 = scalar_select 0, %s14, %s12
  %v16 = vstv %s10
  %17 = vst [vmem:[#allocation3] sm:$0x1] %v16
  loop: start=0, step=1, limit=6
  $region2: #{tpu_custom_call.1} parent=0 // loop_pre_header
    _
  $region3: #{tpu_custom_call.1} parent=0 // loop_header
    %s19 = sphi 0, %s23
    %p20 = scmp.ge.s32.totalorder %s19, 6
    %s26 = sphi 0, %s38
    %s27 = sphi 0, %s34
    %s28 = sphi 0, %s26
    %s29 = sphi 0, %s27
    %s30 = sphi 0, %s28
    %s31 = sphi 0, %s29
    %s43 = sphi 0, %s45
    %s46 = sphi 0, %s43
    %s47 = sphi 0, %s46
    %s63 = sphi 0, %s47
    %s69 = sphi 0, %s71
    %s72 = sphi 0, %s69
    %s73 = sphi 0, %s72
    %s89 = sphi 0, %s73
    %s95 = sphi 0, %s97
    %s98 = sphi 0, %s95
    %s99 = sphi 0, %s98
    %s115 = sphi 0, %s99
    %s121 = sphi 0, %s123
    %s124 = sphi 0, %s121
    %s125 = sphi 0, %s124
    %s141 = sphi 0, %s125
    %s147 = sphi 0, %s149
    %s150 = sphi 0, %s147
    %s151 = sphi 0, %s150
    %s167 = sphi 0, %s151
    %s173 = sphi 0, %s175
    %s176 = sphi 0, %s173
    %s177 = sphi 0, %s176
    %s193 = sphi 0, %s177
    %s199 = sphi 0, %s201
    %s202 = sphi 0, %s199
    %s203 = sphi 0, %s202
    %s219 = sphi 0, %s203
    %s225 = sphi 0, %s227
    %s228 = sphi 0, %s225
    %s229 = sphi 0, %s228
    %s245 = sphi 0, %s229
    %s249 = sphi 0, %s249
    %s251 = sphi 0, %s249
    %s252 = sphi 0, %s251
    %s266 = sphi 0, %s252
    %s270 = sphi 0, %s270
    %s272 = sphi 0, %s270
    %s273 = sphi 0, %s272
    %s287 = sphi 0, %s273
    %s291 = sphi 0, %s291
    %s293 = sphi 0, %s291
    %s294 = sphi 0, %s293
    %s308 = sphi 0, %s294
    %s314 = sphi 0, %s316
    %s317 = sphi 0, %s314
    %s318 = sphi 0, %s317
    %s334 = sphi 0, %s318
  $region4: #{tpu_custom_call.1} parent=0 // loop_header_branch
    %22 = sbr.rel (%p20) target = $region8
  $region5: #{tpu_custom_call.1} parent=0 // loop_body
    %s24 = ssub.s32 %s19, 1
    %s25 = ssub.s32 %s19, 2
    %s32 = sadd.s32 1, %s27
    %p33 = scmp.ge.s32.totalorder %s32, 4
    %s34 = scalar_select %p33, 0, %s32
    %s35 = sadd.s32 1, %s26
    %s36 = scalar_select %p33, %s35, %s26
    %p37 = scmp.ge.s32.totalorder %s36, 1
    %s38 = scalar_select %p37, 0, %s36
    %s39 = ssub.s32 %s27, %s34
    %s40 = ssub.s32 %s26, %s38
    %s41 = sor.u32 %s39, %s40
    %p42 = scmp.eq.s32.totalorder %s41, 0
    %s44 = sadd.s32 %s43, 1
    %s45 = scalar_select %p42, %s43, %s44
    %p48 = pneg %p42
    %p49 = scmp.eq.s32.totalorder %s19, 3
    %p50 = por %p48, %p49
    %p51 = scmp.ne.s32.totalorder %s43, %s46
    %p52 = scmp.eq.s32.totalorder %s19, 0
    %p53 = por %p51, %p52
    %p54 = scmp.ne.s32.totalorder %s43, %s46
    %p55 = scmp.eq.s32.totalorder %s24, 3
    %p56 = por %p54, %p55
    %p57 = scmp.ne.s32.totalorder %s46, %s47
    %p58 = scmp.eq.s32.totalorder %s24, 0
    %p59 = por %p57, %p58
    %p60 = scmp.ne.s32.totalorder %s46, %s47
    %p61 = scmp.eq.s32.totalorder %s25, 3
    %p62 = por %p60, %p61
    %p64 = scmp.ne.s32.totalorder %s47, %s63
    %p65 = scmp.eq.s32.totalorder %s25, 0
    %p66 = por %p64, %p65
    %s67 = ssub.s32 %s27, %s34
    %p68 = scmp.eq.s32.totalorder %s67, 0
    %s70 = sadd.s32 %s69, 1
    %s71 = scalar_select %p68, %s69, %s70
    %p74 = pneg %p68
    %p75 = scmp.eq.s32.totalorder %s19, 3
    %p76 = por %p74, %p75
    %p77 = scmp.ne.s32.totalorder %s69, %s72
    %p78 = scmp.eq.s32.totalorder %s19, 0
    %p79 = por %p77, %p78
    %p80 = scmp.ne.s32.totalorder %s69, %s72
    %p81 = scmp.eq.s32.totalorder %s24, 3
    %p82 = por %p80, %p81
    %p83 = scmp.ne.s32.totalorder %s72, %s73
    %p84 = scmp.eq.s32.totalorder %s24, 0
    %p85 = por %p83, %p84
    %p86 = scmp.ne.s32.totalorder %s72, %s73
    %p87 = scmp.eq.s32.totalorder %s25, 3
    %p88 = por %p86, %p87
    %p90 = scmp.ne.s32.totalorder %s73, %s89
    %p91 = scmp.eq.s32.totalorder %s25, 0
    %p92 = por %p90, %p91
    %s93 = ssub.s32 %s27, %s34
    %p94 = scmp.eq.s32.totalorder %s93, 0
    %s96 = sadd.s32 %s95, 1
    %s97 = scalar_select %p94, %s95, %s96
    %p100 = pneg %p94
    %p101 = scmp.eq.s32.totalorder %s19, 3
    %p102 = por %p100, %p101
    %p103 = scmp.ne.s32.totalorder %s95, %s98
    %p104 = scmp.eq.s32.totalorder %s19, 0
    %p105 = por %p103, %p104
    %p106 = scmp.ne.s32.totalorder %s95, %s98
    %p107 = scmp.eq.s32.totalorder %s24, 3
    %p108 = por %p106, %p107
    %p109 = scmp.ne.s32.totalorder %s98, %s99
    %p110 = scmp.eq.s32.totalorder %s24, 0
    %p111 = por %p109, %p110
    %p112 = scmp.ne.s32.totalorder %s98, %s99
    %p113 = scmp.eq.s32.totalorder %s25, 3
    %p114 = por %p112, %p113
    %p116 = scmp.ne.s32.totalorder %s99, %s115
    %p117 = scmp.eq.s32.totalorder %s25, 0
    %p118 = por %p116, %p117
    %s119 = ssub.s32 %s27, %s34
    %p120 = scmp.eq.s32.totalorder %s119, 0
    %s122 = sadd.s32 %s121, 1
    %s123 = scalar_select %p120, %s121, %s122
    %p126 = pneg %p120
    %p127 = scmp.eq.s32.totalorder %s19, 3
    %p128 = por %p126, %p127
    %p129 = scmp.ne.s32.totalorder %s121, %s124
    %p130 = scmp.eq.s32.totalorder %s19, 0
    %p131 = por %p129, %p130
    %p132 = scmp.ne.s32.totalorder %s121, %s124
    %p133 = scmp.eq.s32.totalorder %s24, 3
    %p134 = por %p132, %p133
    %p135 = scmp.ne.s32.totalorder %s124, %s125
    %p136 = scmp.eq.s32.totalorder %s24, 0
    %p137 = por %p135, %p136
    %p138 = scmp.ne.s32.totalorder %s124, %s125
    %p139 = scmp.eq.s32.totalorder %s25, 3
    %p140 = por %p138, %p139
    %p142 = scmp.ne.s32.totalorder %s125, %s141
    %p143 = scmp.eq.s32.totalorder %s25, 0
    %p144 = por %p142, %p143
    %s145 = ssub.s32 %s27, %s34
    %p146 = scmp.eq.s32.totalorder %s145, 0
    %s148 = sadd.s32 %s147, 1
    %s149 = scalar_select %p146, %s147, %s148
    %p152 = pneg %p146
    %p153 = scmp.eq.s32.totalorder %s19, 3
    %p154 = por %p152, %p153
    %p155 = scmp.ne.s32.totalorder %s147, %s150
    %p156 = scmp.eq.s32.totalorder %s19, 0
    %p157 = por %p155, %p156
    %p158 = scmp.ne.s32.totalorder %s147, %s150
    %p159 = scmp.eq.s32.totalorder %s24, 3
    %p160 = por %p158, %p159
    %p161 = scmp.ne.s32.totalorder %s150, %s151
    %p162 = scmp.eq.s32.totalorder %s24, 0
    %p163 = por %p161, %p162
    %p164 = scmp.ne.s32.totalorder %s150, %s151
    %p165 = scmp.eq.s32.totalorder %s25, 3
    %p166 = por %p164, %p165
    %p168 = scmp.ne.s32.totalorder %s151, %s167
    %p169 = scmp.eq.s32.totalorder %s25, 0
    %p170 = por %p168, %p169
    %s171 = ssub.s32 %s27, %s34
    %p172 = scmp.eq.s32.totalorder %s171, 0
    %s174 = sadd.s32 %s173, 1
    %s175 = scalar_select %p172, %s173, %s174
    %p178 = pneg %p172
    %p179 = scmp.eq.s32.totalorder %s19, 3
    %p180 = por %p178, %p179
    %p181 = scmp.ne.s32.totalorder %s173, %s176
    %p182 = scmp.eq.s32.totalorder %s19, 0
    %p183 = por %p181, %p182
    %p184 = scmp.ne.s32.totalorder %s173, %s176
    %p185 = scmp.eq.s32.totalorder %s24, 3
    %p186 = por %p184, %p185
    %p187 = scmp.ne.s32.totalorder %s176, %s177
    %p188 = scmp.eq.s32.totalorder %s24, 0
    %p189 = por %p187, %p188
    %p190 = scmp.ne.s32.totalorder %s176, %s177
    %p191 = scmp.eq.s32.totalorder %s25, 3
    %p192 = por %p190, %p191
    %p194 = scmp.ne.s32.totalorder %s177, %s193
    %p195 = scmp.eq.s32.totalorder %s25, 0
    %p196 = por %p194, %p195
    %s197 = ssub.s32 %s27, %s34
    %p198 = scmp.eq.s32.totalorder %s197, 0
    %s200 = sadd.s32 %s199, 1
    %s201 = scalar_select %p198, %s199, %s200
    %p204 = pneg %p198
    %p205 = scmp.eq.s32.totalorder %s19, 3
    %p206 = por %p204, %p205
    %p207 = scmp.ne.s32.totalorder %s199, %s202
    %p208 = scmp.eq.s32.totalorder %s19, 0
    %p209 = por %p207, %p208
    %p210 = scmp.ne.s32.totalorder %s199, %s202
    %p211 = scmp.eq.s32.totalorder %s24, 3
    %p212 = por %p210, %p211
    %p213 = scmp.ne.s32.totalorder %s202, %s203
    %p214 = scmp.eq.s32.totalorder %s24, 0
    %p215 = por %p213, %p214
    %p216 = scmp.ne.s32.totalorder %s202, %s203
    %p217 = scmp.eq.s32.totalorder %s25, 3
    %p218 = por %p216, %p217
    %p220 = scmp.ne.s32.totalorder %s203, %s219
    %p221 = scmp.eq.s32.totalorder %s25, 0
    %p222 = por %p220, %p221
    %s223 = ssub.s32 %s27, %s34
    %p224 = scmp.eq.s32.totalorder %s223, 0
    %s226 = sadd.s32 %s225, 1
    %s227 = scalar_select %p224, %s225, %s226
    %p230 = pneg %p224
    %p231 = scmp.eq.s32.totalorder %s19, 3
    %p232 = por %p230, %p231
    %p233 = scmp.ne.s32.totalorder %s225, %s228
    %p234 = scmp.eq.s32.totalorder %s19, 0
    %p235 = por %p233, %p234
    %p236 = scmp.ne.s32.totalorder %s225, %s228
    %p237 = scmp.eq.s32.totalorder %s24, 3
    %p238 = por %p236, %p237
    %p239 = scmp.ne.s32.totalorder %s228, %s229
    %p240 = scmp.eq.s32.totalorder %s24, 0
    %p241 = por %p239, %p240
    %p242 = scmp.ne.s32.totalorder %s228, %s229
    %p243 = scmp.eq.s32.totalorder %s25, 3
    %p244 = por %p242, %p243
    %p246 = scmp.ne.s32.totalorder %s229, %s245
    %p247 = scmp.eq.s32.totalorder %s25, 0
    %p248 = por %p246, %p247
    %s250 = sadd.s32 %s249, 1
    %p253 = scmp.eq.s32.totalorder %s19, 3
    %p254 = scmp.ne.s32.totalorder %s249, %s251
    %p255 = scmp.eq.s32.totalorder %s19, 0
    %p256 = por %p254, %p255
    %p257 = scmp.ne.s32.totalorder %s249, %s251
    %p258 = scmp.eq.s32.totalorder %s24, 3
    %p259 = por %p257, %p258
    %p260 = scmp.ne.s32.totalorder %s251, %s252
    %p261 = scmp.eq.s32.totalorder %s24, 0
    %p262 = por %p260, %p261
    %p263 = scmp.ne.s32.totalorder %s251, %s252
    %p264 = scmp.eq.s32.totalorder %s25, 3
    %p265 = por %p263, %p264
    %p267 = scmp.ne.s32.totalorder %s252, %s266
    %p268 = scmp.eq.s32.totalorder %s25, 0
    %p269 = por %p267, %p268
    %s271 = sadd.s32 %s270, 1
    %p274 = scmp.eq.s32.totalorder %s19, 3
    %p275 = scmp.ne.s32.totalorder %s270, %s272
    %p276 = scmp.eq.s32.totalorder %s19, 0
    %p277 = por %p275, %p276
    %p278 = scmp.ne.s32.totalorder %s270, %s272
    %p279 = scmp.eq.s32.totalorder %s24, 3
    %p280 = por %p278, %p279
    %p281 = scmp.ne.s32.totalorder %s272, %s273
    %p282 = scmp.eq.s32.totalorder %s24, 0
    %p283 = por %p281, %p282
    %p284 = scmp.ne.s32.totalorder %s272, %s273
    %p285 = scmp.eq.s32.totalorder %s25, 3
    %p286 = por %p284, %p285
    %p288 = scmp.ne.s32.totalorder %s273, %s287
    %p289 = scmp.eq.s32.totalorder %s25, 0
    %p290 = por %p288, %p289
    %s292 = sadd.s32 %s291, 1
    %p295 = scmp.eq.s32.totalorder %s19, 3
    %p296 = scmp.ne.s32.totalorder %s291, %s293
    %p297 = scmp.eq.s32.totalorder %s19, 0
    %p298 = por %p296, %p297
    %p299 = scmp.ne.s32.totalorder %s291, %s293
    %p300 = scmp.eq.s32.totalorder %s24, 3
    %p301 = por %p299, %p300
    %p302 = scmp.ne.s32.totalorder %s293, %s294
    %p303 = scmp.eq.s32.totalorder %s24, 0
    %p304 = por %p302, %p303
    %p305 = scmp.ne.s32.totalorder %s293, %s294
    %p306 = scmp.eq.s32.totalorder %s25, 3
    %p307 = por %p305, %p306
    %p309 = scmp.ne.s32.totalorder %s294, %s308
    %p310 = scmp.eq.s32.totalorder %s25, 0
    %p311 = por %p309, %p310
    %s312 = ssub.s32 %s26, %s38
    %p313 = scmp.eq.s32.totalorder %s312, 0
    %s315 = sadd.s32 %s314, 1
    %s316 = scalar_select %p313, %s314, %s315
    %p319 = pneg %p313
    %p320 = scmp.eq.s32.totalorder %s19, 3
    %p321 = por %p319, %p320
    %p322 = scmp.ne.s32.totalorder %s314, %s317
    %p323 = scmp.eq.s32.totalorder %s19, 0
    %p324 = por %p322, %p323
    %p325 = scmp.ne.s32.totalorder %s314, %s317
    %p326 = scmp.eq.s32.totalorder %s24, 3
    %p327 = por %p325, %p326
    %p328 = scmp.ne.s32.totalorder %s317, %s318
    %p329 = scmp.eq.s32.totalorder %s24, 0
    %p330 = por %p328, %p329
    %p331 = scmp.ne.s32.totalorder %s317, %s318
    %p332 = scmp.eq.s32.totalorder %s25, 3
    %p333 = por %p331, %p332
    %p335 = scmp.ne.s32.totalorder %s318, %s334
    %p336 = scmp.eq.s32.totalorder %s25, 0
    %p337 = por %p335, %p336
    %p338 = scmp.le.s32.totalorder 1, %s19
    %p339 = scmp.lt.s32.totalorder %s19, 5
    %p340 = pnand %p338, %p339
    %p341 = pneg %p340
    // Predicated region
    $region9: #{tpu_custom_call.1} parent=5 // pred_check
      _
    $region10: #{tpu_custom_call.1} parent=5 // pred_check_branch
      %343 = sbr.rel (%p340) target = $region12
    $region11: #{tpu_custom_call.1} parent=5 // pred_region
      %s344 = ssub.s32 %s19, 1
      // Predicated region
      $region13: #{tpu_custom_call.1} parent=11 // pred_check
        %p345 = pneg %p262
      $region14: #{tpu_custom_call.1} parent=11 // pred_check_branch
        %347 = sbr.rel (%p345) target = $region16
      $region15: #{tpu_custom_call.1} parent=11 // pred_region
        _
      $region16: #{tpu_custom_call.1} parent=11 // pred_fallthru
        _
      // Predicated region
      $region17: #{tpu_custom_call.1} parent=11 // pred_check
        %p348 = pneg %p283
      $region18: #{tpu_custom_call.1} parent=11 // pred_check_branch
        %350 = sbr.rel (%p348) target = $region20
      $region19: #{tpu_custom_call.1} parent=11 // pred_region
        _
      $region20: #{tpu_custom_call.1} parent=11 // pred_fallthru
        _
      // Predicated region
      $region21: #{tpu_custom_call.1} parent=11 // pred_check
        %p351 = pneg %p304
      $region22: #{tpu_custom_call.1} parent=11 // pred_check_branch
        %353 = sbr.rel (%p351) target = $region24
      $region23: #{tpu_custom_call.1} parent=11 // pred_region
        _
      $region24: #{tpu_custom_call.1} parent=11 // pred_fallthru
        _
    $region12: #{tpu_custom_call.1} parent=5 // pred_fallthru
      _
    %p354 = scmp.lt.s32.totalorder %s19, 4
    // Predicated region
    $region25: #{tpu_custom_call.1} parent=5 // pred_check
      %p355 = pneg %p354
    $region26: #{tpu_custom_call.1} parent=5 // pred_check_branch
      %357 = sbr.rel (%p355) target = $region28
    $region27: #{tpu_custom_call.1} parent=5 // pred_region
      // Predicated region
      $region29: #{tpu_custom_call.1} parent=27 // pred_check
        %p358 = pneg %p53
      $region30: #{tpu_custom_call.1} parent=27 // pred_check_branch
        %360 = sbr.rel (%p358) target = $region32
      $region31: #{tpu_custom_call.1} parent=27 // pred_region
        %p361 = scmp.lt.s32.totalorder %s27, 3
        %s362 = scalar_select %p361, %s27, 3
        %p363 = scmp.lt.s32.totalorder %s26, 0
        %s364 = scalar_select %p363, %s26, 0
        %s365 = smul.addr %s364, 2
        %s366 = smul.addr %s362, 2
        %s367 = sadd.s32 %s365, %s366
        %s368 = smul.addr %s367, 4
        %s369 = scalar_lea.vmem %s0, %s368
      $region32: #{tpu_custom_call.1} parent=27 // pred_fallthru
        _
      // Predicated region
      $region33: #{tpu_custom_call.1} parent=27 // pred_check
        %p370 = pneg %p79
      $region34: #{tpu_custom_call.1} parent=27 // pred_check_branch
        %372 = sbr.rel (%p370) target = $region36
      $region35: #{tpu_custom_call.1} parent=27 // pred_region
        %p373 = scmp.lt.s32.totalorder %s27, 3
        %s374 = scalar_select %p373, %s27, 3
        %s375 = smul.addr %s374, 32
        %s376 = smul.addr %s375, 4
        %s377 = scalar_lea.vmem %s1, %s376
      $region36: #{tpu_custom_call.1} parent=27 // pred_fallthru
        _
      // Predicated region
      $region37: #{tpu_custom_call.1} parent=27 // pred_check
        %p378 = pneg %p105
      $region38: #{tpu_custom_call.1} parent=27 // pred_check_branch
        %380 = sbr.rel (%p378) target = $region40
      $region39: #{tpu_custom_call.1} parent=27 // pred_region
        %p381 = scmp.lt.s32.totalorder %s27, 3
        %s382 = scalar_select %p381, %s27, 3
        %s383 = scalar_lea.vmem %s2, %s382
      $region40: #{tpu_custom_call.1} parent=27 // pred_fallthru
        _
      // Predicated region
      $region41: #{tpu_custom_call.1} parent=27 // pred_check
        %p384 = pneg %p131
      $region42: #{tpu_custom_call.1} parent=27 // pred_check_branch
        %386 = sbr.rel (%p384) target = $region44
      $region43: #{tpu_custom_call.1} parent=27 // pred_region
        %p387 = scmp.lt.s32.totalorder %s27, 3
        %s388 = scalar_select %p387, %s27, 3
        %s389 = smul.addr %s388, 8
        %s390 = smul.addr %s389, 4
        %s391 = scalar_lea.vmem %s3, %s390
      $region44: #{tpu_custom_call.1} parent=27 // pred_fallthru
        _
      // Predicated region
      $region45: #{tpu_custom_call.1} parent=27 // pred_check
        %p392 = pneg %p157
      $region46: #{tpu_custom_call.1} parent=27 // pred_check_branch
        %394 = sbr.rel (%p392) target = $region48
      $region47: #{tpu_custom_call.1} parent=27 // pred_region
        %p395 = scmp.lt.s32.totalorder %s27, 3
        %s396 = scalar_select %p395, %s27, 3
        %s397 = scalar_lea.vmem %s4, %s396
      $region48: #{tpu_custom_call.1} parent=27 // pred_fallthru
        _
      // Predicated region
      $region49: #{tpu_custom_call.1} parent=27 // pred_check
        %p398 = pneg %p183
      $region50: #{tpu_custom_call.1} parent=27 // pred_check_branch
        %400 = sbr.rel (%p398) target = $region52
      $region51: #{tpu_custom_call.1} parent=27 // pred_region
        %p401 = scmp.lt.s32.totalorder %s27, 3
        %s402 = scalar_select %p401, %s27, 3
        %s403 = scalar_lea.vmem %s5, %s402
      $region52: #{tpu_custom_call.1} parent=27 // pred_fallthru
        _
      // Predicated region
      $region53: #{tpu_custom_call.1} parent=27 // pred_check
        %p404 = pneg %p209
      $region54: #{tpu_custom_call.1} parent=27 // pred_check_branch
        %406 = sbr.rel (%p404) target = $region56
      $region55: #{tpu_custom_call.1} parent=27 // pred_region
        %p407 = scmp.lt.s32.totalorder %s27, 3
        %s408 = scalar_select %p407, %s27, 3
        %s409 = scalar_lea.vmem %s6, %s408
      $region56: #{tpu_custom_call.1} parent=27 // pred_fallthru
        _
      // Predicated region
      $region57: #{tpu_custom_call.1} parent=27 // pred_check
        %p410 = pneg %p235
      $region58: #{tpu_custom_call.1} parent=27 // pred_check_branch
        %412 = sbr.rel (%p410) target = $region60
      $region59: #{tpu_custom_call.1} parent=27 // pred_region
        %p413 = scmp.lt.s32.totalorder %s27, 3
        %s414 = scalar_select %p413, %s27, 3
        %s415 = scalar_lea.vmem %s7, %s414
      $region60: #{tpu_custom_call.1} parent=27 // pred_fallthru
        _
    $region28: #{tpu_custom_call.1} parent=5 // pred_fallthru
      _
    %p416 = scmp.le.s32.totalorder 1, %s19
    %p417 = scmp.lt.s32.totalorder %s19, 5
    %p418 = pnand %p416, %p417
    %p419 = pneg %p418
    // Predicated region
    $region61: #{tpu_custom_call.1} parent=5 // pred_check
      _
    $region62: #{tpu_custom_call.1} parent=5 // pred_check_branch
      %421 = sbr.rel (%p418) target = $region64
    $region63: #{tpu_custom_call.1} parent=5 // pred_region
      %s422 = ssub.s32 %s19, 1
      %p423 = scmp.lt.s32.totalorder %s29, 3
      %s424 = scalar_select %p423, %s29, 3
      %p425 = scmp.lt.s32.totalorder %s28, 0
      %s426 = scalar_select %p425, %s28, 0
      %s427 = smul.addr %s426, 2
      %s428 = smul.addr %s424, 2
      %s429 = sadd.s32 %s427, %s428
      %s430 = smul.addr %s429, 4
      %s431 = scalar_lea.vmem %s0, %s430
      %p432 = pneg %p59
      %p433 = pneg %p56
      %p434 = scmp.lt.s32.totalorder %s29, 3
      %s435 = scalar_select %p434, %s29, 3
      %s436 = smul.addr %s435, 32
      %s437 = smul.addr %s436, 4
      %s438 = scalar_lea.vmem %s1, %s437
      %p439 = pneg %p85
      %p440 = pneg %p82
      %p441 = scmp.lt.s32.totalorder %s29, 3
      %s442 = scalar_select %p441, %s29, 3
      %s443 = scalar_lea.vmem %s2, %s442
      %p444 = pneg %p111
      %p445 = pneg %p108
      %p446 = scmp.lt.s32.totalorder %s29, 3
      %s447 = scalar_select %p446, %s29, 3
      %s448 = smul.addr %s447, 8
      %s449 = smul.addr %s448, 4
      %s450 = scalar_lea.vmem %s3, %s449
      %p451 = pneg %p137
      %p452 = pneg %p134
      %p453 = scmp.lt.s32.totalorder %s29, 3
      %s454 = scalar_select %p453, %s29, 3
      %s455 = scalar_lea.vmem %s4, %s454
      %p456 = pneg %p163
      %p457 = pneg %p160
      %p458 = scmp.lt.s32.totalorder %s29, 3
      %s459 = scalar_select %p458, %s29, 3
      %s460 = scalar_lea.vmem %s5, %s459
      %p461 = pneg %p189
      %p462 = pneg %p186
      %p463 = scmp.lt.s32.totalorder %s29, 3
      %s464 = scalar_select %p463, %s29, 3
      %s465 = scalar_lea.vmem %s6, %s464
      %p466 = pneg %p215
      %p467 = pneg %p212
      %p468 = scmp.lt.s32.totalorder %s29, 3
      %s469 = scalar_select %p468, %s29, 3
      %s470 = scalar_lea.vmem %s7, %s469
      %p471 = pneg %p241
      %p472 = pneg %p238
      %p473 = pneg %p262
      %p474 = pneg %p259
      %p475 = pneg %p283
      %p476 = pneg %p280
      %p477 = pneg %p304
      %p478 = pneg %p301
      %p479 = pneg %p330
      %p480 = pneg %p327
      %p481 = scmp.lt.s32.totalorder %s28, 0
      %s482 = scalar_select %p481, %s28, 0
      %s483 = smul.addr %s482, 8
      %s484 = scalar_lea.vmem %s11, %s483
      %p485 = scmp.lt.s32.totalorder %s29, 3
      %s486 = scalar_select %p485, %s29, 3
      %p487 = scmp.lt.s32.totalorder %s28, 0
      %s488 = scalar_select %p487, %s28, 0
      %s489 = smul.addr %s488, 2
      %s490 = smul.addr %s486, 2
      %s491 = sadd.s32 %s489, %s490
      %s492 = smul.addr %s491, 4
      %s493 = scalar_lea.vmem %s0, %s492
      %p494 = scmp.lt.s32.totalorder %s29, 3
      %s495 = scalar_select %p494, %s29, 3
      %s496 = smul.addr %s495, 32
      %s497 = smul.addr %s496, 4
      %s498 = scalar_lea.vmem %s1, %s497
      %p499 = scmp.lt.s32.totalorder %s29, 3
      %s500 = scalar_select %p499, %s29, 3
      %s501 = scalar_lea.vmem %s2, %s500
      %p502 = scmp.lt.s32.totalorder %s29, 3
      %s503 = scalar_select %p502, %s29, 3
      %s504 = smul.addr %s503, 8
      %s505 = smul.addr %s504, 4
      %s506 = scalar_lea.vmem %s3, %s505
      %p507 = scmp.lt.s32.totalorder %s29, 3
      %s508 = scalar_select %p507, %s29, 3
      %s509 = scalar_lea.vmem %s4, %s508
      %p510 = scmp.lt.s32.totalorder %s29, 3
      %s511 = scalar_select %p510, %s29, 3
      %s512 = scalar_lea.vmem %s5, %s511
      %p513 = scmp.lt.s32.totalorder %s29, 3
      %s514 = scalar_select %p513, %s29, 3
      %s515 = scalar_lea.vmem %s6, %s514
      %p516 = scmp.lt.s32.totalorder %s29, 3
      %s517 = scalar_select %p516, %s29, 3
      %s518 = scalar_lea.vmem %s7, %s517
      %p519 = scmp.lt.s32.totalorder %s28, 0
      %s520 = scalar_select %p519, %s28, 0
      %s521 = smul.addr %s520, 8
      %s522 = scalar_lea.vmem %s11, %s521
      %p524 = scmp.eq.s32.totalorder %s29, 0
      // Predicated region
      $region65: #{tpu_custom_call.1} parent=63 // pred_check
        %p525 = pneg %p524
      $region66: #{tpu_custom_call.1} parent=63 // pred_check_branch
        %527 = sbr.rel (%p525) target = $region68
      $region67: #{tpu_custom_call.1} parent=63 // pred_region
        %v528 = vld [vmem:[%s8] sm:$0x1]
        %v530 = vlaneseq
        %v531 = vshrl.u32 %v530, 7
        %v532 = vsub.s32 0, %v531
        %v533 = vrot.slane %v528, %v532
        %v535 = vadd.f32 %v533, 0.0
        %vm536 = vcmask 523264
        %537 = vst.msk [vmem:[#allocation2] sm:$0xff] %vm536, %v535
      $region68: #{tpu_custom_call.1} parent=63 // pred_fallthru
        _
      %v538 = vld [vmem:[%s493] sm:$0xff]
      %vm539 = vcmp.ne.bf16.partialorder %v538, %v538
      %v540 = vsel %vm539, 0, %v538
      %v541 = vld [vmem:[%s498] sm:$0xf]
      %v542 = vld [vmem:[%s498 + $0x4] sm:$0xf]
      %v543 = vld [vmem:[%s498 + $0x8] sm:$0xf]
      %v544 = vld [vmem:[%s498 + $0xc] sm:$0xf]
      %v545 = vld [vmem:[%s498 + $0x10] sm:$0xf]
      %v546 = vld [vmem:[%s498 + $0x14] sm:$0xf]
      %v547 = vld [vmem:[%s498 + $0x18] sm:$0xf]
      %v548 = vld [vmem:[%s498 + $0x1c] sm:$0xf]
      %v549 = vld [vmem:[%s498 + $0x20] sm:$0xf]
      %v550 = vld [vmem:[%s498 + $0x24] sm:$0xf]
      %v551 = vld [vmem:[%s498 + $0x28] sm:$0xf]
      %v552 = vld [vmem:[%s498 + $0x2c] sm:$0xf]
      %v553 = vld [vmem:[%s498 + $0x30] sm:$0xf]
      %v554 = vld [vmem:[%s498 + $0x34] sm:$0xf]
      %v555 = vld [vmem:[%s498 + $0x38] sm:$0xf]
      %v556 = vld [vmem:[%s498 + $0x3c] sm:$0xf]
      %v557 = vld [vmem:[%s498 + $0x40] sm:$0xf]
      %v558 = vld [vmem:[%s498 + $0x44] sm:$0xf]
      %v559 = vld [vmem:[%s498 + $0x48] sm:$0xf]
      %v560 = vld [vmem:[%s498 + $0x4c] sm:$0xf]
      %v561 = vld [vmem:[%s498 + $0x50] sm:$0xf]
      %v562 = vld [vmem:[%s498 + $0x54] sm:$0xf]
      %v563 = vld [vmem:[%s498 + $0x58] sm:$0xf]
      %v564 = vld [vmem:[%s498 + $0x5c] sm:$0xf]
      %v565 = vld [vmem:[%s498 + $0x60] sm:$0xf]
      %v566 = vld [vmem:[%s498 + $0x64] sm:$0xf]
      %v567 = vld [vmem:[%s498 + $0x68] sm:$0xf]
      %v568 = vld [vmem:[%s498 + $0x6c] sm:$0xf]
      %v569 = vld [vmem:[%s498 + $0x70] sm:$0xf]
      %v570 = vld [vmem:[%s498 + $0x74] sm:$0xf]
      %v571 = vld [vmem:[%s498 + $0x78] sm:$0xf]
      %v572 = vld [vmem:[%s498 + $0x7c] sm:$0xf]
      %v573 = vld [vmem:[%s501] sm:$0x1]
      %v575 = vlaneseq
      %v576 = vshrl.u32 %v575, 7
      %v577 = vsub.s32 0, %v576
      %v578 = vrot.slane %v573, %v577
      %v581 = vunpack.c.l.b16 %v540
      %v582 = vunpack.c.h.b16 %v540
      %v583 = vpack.c.b16 %v581, %v581
      %v584 = vpack.c.b16 %v582, %v582
      %v619 = vunpack.c.l.b16 %v541
      %v620 = vunpack.c.l.b16 %v542
      %v621 = vunpack.c.l.b16 %v543
      %v622 = vunpack.c.l.b16 %v544
      %v623 = vunpack.c.l.b16 %v545
      %v624 = vunpack.c.l.b16 %v546
      %v625 = vunpack.c.l.b16 %v547
      %v626 = vunpack.c.l.b16 %v548
      %v627 = vunpack.c.l.b16 %v549
      %v628 = vunpack.c.l.b16 %v550
      %v629 = vunpack.c.l.b16 %v551
      %v630 = vunpack.c.l.b16 %v552
      %v631 = vunpack.c.l.b16 %v553
      %v632 = vunpack.c.l.b16 %v554
      %v633 = vunpack.c.l.b16 %v555
      %v634 = vunpack.c.l.b16 %v556
      %v635 = vunpack.c.l.b16 %v557
      %v636 = vunpack.c.l.b16 %v558
      %v637 = vunpack.c.l.b16 %v559
      %v638 = vunpack.c.l.b16 %v560
      %v639 = vunpack.c.l.b16 %v561
      %v640 = vunpack.c.l.b16 %v562
      %v641 = vunpack.c.l.b16 %v563
      %v642 = vunpack.c.l.b16 %v564
      %v643 = vunpack.c.l.b16 %v565
      %v644 = vunpack.c.l.b16 %v566
      %v645 = vunpack.c.l.b16 %v567
      %v646 = vunpack.c.l.b16 %v568
      %v647 = vunpack.c.l.b16 %v569
      %v648 = vunpack.c.l.b16 %v570
      %v649 = vunpack.c.l.b16 %v571
      %v650 = vunpack.c.l.b16 %v572
      %v651 = vpack.c.b16 %v620, %v619
      %v652 = vpack.c.b16 %v622, %v621
      %v653 = vpack.c.b16 %v624, %v623
      %v654 = vpack.c.b16 %v626, %v625
      %v655 = vpack.c.b16 %v628, %v627
      %v656 = vpack.c.b16 %v630, %v629
      %v657 = vpack.c.b16 %v632, %v631
      %v658 = vpack.c.b16 %v634, %v633
      %v659 = vpack.c.b16 %v636, %v635
      %v660 = vpack.c.b16 %v638, %v637
      %v661 = vpack.c.b16 %v640, %v639
      %v662 = vpack.c.b16 %v642, %v641
      %v663 = vpack.c.b16 %v644, %v643
      %v664 = vpack.c.b16 %v646, %v645
      %v665 = vpack.c.b16 %v648, %v647
      %v666 = vpack.c.b16 %v650, %v649
      %683 = vmatprep.subr.bf16.mxu0 0
      %684 = vmatpush1.bf16.msra.mxu0 %v651
      %685 = vmatprep.subr.bf16.mxu0 0
      %686 = vmatpush1.bf16.msra.mxu0 %v652
      %687 = vmatprep.subr.bf16.mxu0 0
      %688 = vmatpush1.bf16.msra.mxu0 %v653
      %689 = vmatprep.subr.bf16.mxu0 0
      %690 = vmatpush1.bf16.msra.mxu0 %v654
      %691 = vmatprep.subr.bf16.mxu0 0
      %692 = vmatpush1.bf16.msra.mxu0 %v655
      %693 = vmatprep.subr.bf16.mxu0 0
      %694 = vmatpush1.bf16.msra.mxu0 %v656
      %695 = vmatprep.subr.bf16.mxu0 0
      %696 = vmatpush1.bf16.msra.mxu0 %v657
      %697 = vmatprep.subr.bf16.mxu0 0
      %698 = vmatpush1.bf16.msra.mxu0 %v658
      %699 = vmatprep.subr.bf16.mxu0 0
      %700 = vmatpush1.bf16.msra.mxu0 %v659
      %701 = vmatprep.subr.bf16.mxu0 0
      %702 = vmatpush1.bf16.msra.mxu0 %v660
      %703 = vmatprep.subr.bf16.mxu0 0
      %704 = vmatpush1.bf16.msra.mxu0 %v661
      %705 = vmatprep.subr.bf16.mxu0 0
      %706 = vmatpush1.bf16.msra.mxu0 %v662
      %707 = vmatprep.subr.bf16.mxu0 0
      %708 = vmatpush1.bf16.msra.mxu0 %v663
      %709 = vmatprep.subr.bf16.mxu0 0
      %710 = vmatpush1.bf16.msra.mxu0 %v664
      %711 = vmatprep.subr.bf16.mxu0 0
      %712 = vmatpush1.bf16.msra.mxu0 %v665
      %713 = vmatprep.subr.bf16.mxu0 0
      %714 = vmatpush1.bf16.msra.mxu0 %v666
      %715 = vmatprep.mubr.bf16.mxu0 %v584
      %716 = vmatmul.mubr.bf16.gmra.mrb[0].mxu0 %v583
      %v717 = vpop.f32.mrb[0].mxu0
      %v718 = vadd.f32 %v578, %v717
      %v719 = vpop.f32.mrb[0].mxu0
      %v720 = vpop.f32.mrb[0].mxu0
      %v721 = vpop.f32.mrb[0].mxu0
      %722 = vdwg.mxu0
      %v723 = vmax.f32 %v718, 0.0
      %v724 = vpack.c.bf16 %v723, %v723
      %v725 = vld [vmem:[%s506] sm:$0xf]
      %v726 = vld [vmem:[%s506 + $0x4] sm:$0xf]
      %v727 = vld [vmem:[%s506 + $0x8] sm:$0xf]
      %v728 = vld [vmem:[%s506 + $0xc] sm:$0xf]
      %v729 = vld [vmem:[%s506 + $0x10] sm:$0xf]
      %v730 = vld [vmem:[%s506 + $0x14] sm:$0xf]
      %v731 = vld [vmem:[%s506 + $0x18] sm:$0xf]
      %v732 = vld [vmem:[%s506 + $0x1c] sm:$0xf]
      %v733 = vld [vmem:[%s509] sm:$0x1]
      %v735 = vlaneseq
      %v736 = vshrl.u32 %v735, 7
      %v737 = vsub.s32 0, %v736
      %v738 = vrot.slane %v733, %v737
      %v748 = vunpack.c.l.b16 %v725
      %v749 = vunpack.c.l.b16 %v726
      %v750 = vunpack.c.l.b16 %v727
      %v751 = vunpack.c.l.b16 %v728
      %v752 = vunpack.c.l.b16 %v729
      %v753 = vunpack.c.l.b16 %v730
      %v754 = vunpack.c.l.b16 %v731
      %v755 = vunpack.c.l.b16 %v732
      %v756 = vpack.c.b16 %v749, %v748
      %v757 = vpack.c.b16 %v751, %v750
      %v758 = vpack.c.b16 %v753, %v752
      %v759 = vpack.c.b16 %v755, %v754
      %vm764 = vcmask 523264
      %v766 = vsel %vm764, %v724, 0
      %768 = vmatprep.subr.bf16.mxu0 0
      %769 = vmatpush1.bf16.msra.mxu0 %v756
      %770 = vmatprep.subr.bf16.mxu0 0
      %771 = vmatpush1.bf16.msra.mxu0 %v757
      %772 = vmatprep.subr.bf16.mxu0 0
      %773 = vmatpush1.bf16.msra.mxu0 %v758
      %774 = vmatprep.subr.bf16.mxu0 0
      %775 = vmatpush1.bf16.msra.mxu0 %v759
      %776 = vmatprep.subr.bf16.mxu0 0
      %777 = vmatpush1.bf16.msra.mxu0 0
      %778 = vmatprep.subr.bf16.mxu0 0
      %779 = vmatpush1.bf16.msra.mxu0 0
      %780 = vmatprep.subr.bf16.mxu0 0
      %781 = vmatpush1.bf16.msra.mxu0 0
      %782 = vmatprep.subr.bf16.mxu0 0
      %783 = vmatpush1.bf16.msra.mxu0 0
      %784 = vmatprep.subr.bf16.mxu0 0
      %785 = vmatpush1.bf16.msra.mxu0 0
      %786 = vmatprep.subr.bf16.mxu0 0
      %787 = vmatpush1.bf16.msra.mxu0 0
      %788 = vmatprep.subr.bf16.mxu0 0
      %789 = vmatpush1.bf16.msra.mxu0 0
      %790 = vmatprep.subr.bf16.mxu0 0
      %791 = vmatpush1.bf16.msra.mxu0 0
      %792 = vmatprep.subr.bf16.mxu0 0
      %793 = vmatpush1.bf16.msra.mxu0 0
      %794 = vmatprep.subr.bf16.mxu0 0
      %795 = vmatpush1.bf16.msra.mxu0 0
      %796 = vmatprep.subr.bf16.mxu0 0
      %797 = vmatpush1.bf16.msra.mxu0 0
      %798 = vmatprep.subr.bf16.mxu0 0
      %799 = vmatpush1.bf16.msra.mxu0 0
      %800 = vmatprep.mubr.bf16.mxu0 0
      %801 = vmatmul.mubr.bf16.gmra.mrb[0].mxu0 %v766
      %v802 = vpop.f32.mrb[0].mxu0
      %v803 = vadd.f32 %v738, %v802
      %v804 = vpop.f32.mrb[0].mxu0
      %v805 = vpop.f32.mrb[0].mxu0
      %v806 = vpop.f32.mrb[0].mxu0
      %807 = vdwg.mxu0
      %v808 = vmax.f32 %v803, 0.0
      %v809 = vld [vmem:[%s512] sm:$0x1]
      %v811 = vlaneseq
      %v812 = vshrl.u32 %v811, 7
      %v813 = vsub.s32 0, %v812
      %v814 = vrot.slane %v809, %v813
      %v816 = vmul.f32 %v808, %v814
      %817 = vadd.xlane.f32.xlu0 %v816
      %v818 = vpop.xlane.xlu0 %817
      %v819 = vld [vmem:[%s515] sm:$0x1]
      %v821 = vlaneseq
      %v822 = vshrl.u32 %v821, 7
      %v823 = vsub.s32 0, %v822
      %v824 = vrot.slane %v819, %v823
      %v826 = vadd.f32 %v818, %v824
      %v827 = vld [vmem:[#allocation2] sm:$0xff]
      %v828 = vmax.f32 %v826, 0.0
      %v829 = vld [vmem:[%s518] sm:$0x1]
      %831 = vset.pattern.permute.xlu0 0
      %832 = vperm.xlu0 %831, %v828
      %v833 = vpop.permute.xlu0 %832
      %v836 = vlaneseq
      %v837 = vshrl.u32 %v836, 7
      %v838 = vsub.s32 0, %v837
      %v839 = vrot.slane %v829, %v838
      %v841 = vmul.f32 %v833, %v839
      %v842 = vadd.f32 %v827, %v841
      %843 = vst.msk [vmem:[#allocation2] sm:$0xff] %vm764, %v842
      %p844 = scmp.eq.s32.totalorder %s29, 3
      // Predicated region
      $region69: #{tpu_custom_call.1} parent=63 // pred_check
        %p845 = pneg %p844
      $region70: #{tpu_custom_call.1} parent=63 // pred_check_branch
        %847 = sbr.rel (%p845) target = $region72
      $region71: #{tpu_custom_call.1} parent=63 // pred_region
        %v848 = vld [vmem:[#allocation2] sm:$0xff]
        %v849 = vmax.f32 %v848, 0.0
        %v850 = vld [vmem:[%s9] sm:$0x1]
        %v852 = vlaneseq
        %v853 = vshrl.u32 %v852, 7
        %v854 = vsub.s32 0, %v853
        %v855 = vrot.slane %v850, %v854
        %v857 = vmul.f32 %v849, %v855
        %v858 = vsel %vm764, %v857, 0.0
        %859 = vadd.xlane.f32.xlu0 %v858
        %v860 = vpop.xlane.xlu0 %859
        %v861 = vld [vmem:[#allocation3] sm:$0x1]
        %v863 = vlaneseq
        %v864 = vshrl.u32 %v863, 7
        %v865 = vsub.s32 0, %v864
        %v866 = vrot.slane %v861, %v865
        %v868 = vadd.f32 %v860, %v866
        %vm869 = vcmask 7168
        %870 = vst.msk [vmem:[%s522] sm:$0xff] %vm869, %v868
      $region72: #{tpu_custom_call.1} parent=63 // pred_fallthru
        _
      %p871 = scmp.lt.s32.totalorder %s28, 0
      %s872 = scalar_select %p871, %s28, 0
      %s873 = smul.addr %s872, 8
      %s874 = scalar_lea.vmem %s11, %s873
      // Predicated region
      $region73: #{tpu_custom_call.1} parent=63 // pred_check
        %p875 = pneg %p327
      $region74: #{tpu_custom_call.1} parent=63 // pred_check_branch
        %877 = sbr.rel (%p875) target = $region76
      $region75: #{tpu_custom_call.1} parent=63 // pred_region
        _
      $region76: #{tpu_custom_call.1} parent=63 // pred_fallthru
        _
      // Predicated region
      $region77: #{tpu_custom_call.1} parent=63 // pred_check
        %p878 = pneg %p327
      $region78: #{tpu_custom_call.1} parent=63 // pred_check_branch
        %880 = sbr.rel (%p878) target = $region80
      $region79: #{tpu_custom_call.1} parent=63 // pred_region
        %p881 = scmp.lt.s32.totalorder %s28, 0
        %s882 = scalar_select %p881, %s28, 0
        %s883 = smul.addr %s882, 8
        %s884 = scalar_lea.vmem %s11, %s883
      $region80: #{tpu_custom_call.1} parent=63 // pred_fallthru
        _
    $region64: #{tpu_custom_call.1} parent=5 // pred_fallthru
      _
    %p885 = scmp.le.s32.totalorder 2, %s19
    // Predicated region
    $region81: #{tpu_custom_call.1} parent=5 // pred_check
      %p886 = pneg %p885
    $region82: #{tpu_custom_call.1} parent=5 // pred_check_branch
      %888 = sbr.rel (%p886) target = $region84
    $region83: #{tpu_custom_call.1} parent=5 // pred_region
      %s889 = ssub.s32 %s19, 2
    $region84: #{tpu_custom_call.1} parent=5 // pred_fallthru
      _
  $region6: #{tpu_custom_call.1} parent=0 // loop_footer
    %s23 = sadd.s32 1, %s19
  $region7: #{tpu_custom_call.1} parent=0 // loop_footer_branch
    %18 = sbr.rel target = $region3
  $region8: #{tpu_custom_call.1} parent=0 // loop_exit
    _

</llo_original>
